<compile_context>
chip_gen: v7x
topology: tpu7x:2x2x1
jax: 0.10.0
libtpu: 0.0.40
codegen_flags: <defaults>
</compile_context>

<pallas_src>
import jax
import jax.numpy as jnp
from jax.experimental import pallas as pl
from jax.experimental.pallas import tpu as pltpu

_LANE = 128


def _make_kernel(*, S, L_in, L1p, Lp1, L2p, Lp2, p1, p2, d1, d2, K1, K2, O):
    L_cat = S * Lp1

    def kernel(x_ref, bdw1_ref, b1_ref, bdw2_ref, b2_ref, wlt_ref, rsel_ref,
               bl_ref, out_ref, r1_scr, r2_scr):
        f32 = jnp.float32
        bf16 = jnp.bfloat16

        # ---- conv1 + ReLU per sequence: K1 tap matmuls, bf16 in / f32 acc --
        x = x_ref[0]                                    # (S*L_in, Bg*C) bf16
        b1 = b1_ref[...]                                # (1, Bg*H0) f32
        for s in range(S):
            base = s * L_in
            acc = jnp.dot(x[base:base + L1p, :], bdw1_ref[0],
                          preferred_element_type=f32)
            for k in range(1, K1):
                off = base + k * d1
                acc = acc + jnp.dot(x[off:off + L1p, :], bdw1_ref[k],
                                    preferred_element_type=f32)
            r1_scr[s * L1p:(s + 1) * L1p, :] = jnp.maximum(acc + b1, 0.0)

        # ---- pool1: strided sublane reads + VPU max.  Row order (s, t) is
        #      already the per-subject concatenation; drop1 = identity. ------
        cat = r1_scr[pl.ds(0, L_cat, stride=p1), :]
        for j in range(1, p1):
            cat = jnp.maximum(cat, r1_scr[pl.ds(j, L_cat, stride=p1), :])
        # cat: (L_cat, Bg*H0) f32

        # ---- conv2: fold the K2 taps into ONE MXU push ---------------------
        lhs2 = jnp.concatenate(
            [cat[k * d2:k * d2 + L2p, :] for k in range(K2)],
            axis=1).astype(bf16)                        # (L2p, K2*Bg*H0)
        r2 = jnp.dot(lhs2, bdw2_ref[...], preferred_element_type=f32)
        r2_scr[...] = jnp.maximum(r2 + b2_ref[...], 0.0)   # (L2p, Bg*H1)

        # ---- pool2: strided sublane reads + VPU max; drop2 = identity ------
        pooled = r2_scr[pl.ds(0, Lp2, stride=p2), :]
        for j in range(1, p2):
            pooled = jnp.maximum(pooled, r2_scr[pl.ds(j, Lp2, stride=p2), :])
        # pooled: (Lp2, Bg*H1) f32

        # ---- flatten (H1-major, = torch .view) + linear + sigmoid ----------
        wlt = wlt_ref[...]                              # (O, Lp2, Bg*H1) f32
        rsel = rsel_ref[...]                            # (Bg*H1, Bg) f32
        ones_row = jnp.ones((1, Lp2), dtype=f32)        # hoisted out of o-loop
        rows = []
        for o in range(O):                              # O is typically 1
            srow = jnp.dot(ones_row, pooled * wlt[o],
                           preferred_element_type=f32)            # (1, Bg*H1)
            rows.append(jnp.dot(srow, rsel, preferred_element_type=f32))
        logits = rows[0] if O == 1 else jnp.concatenate(rows, axis=0)
        logits = logits + bl_ref[...]                   # (O, Bg)
        out_ref[0] = pl.reciprocal(1.0 + jnp.exp(-logits))  # sigmoid

    return kernel


def build_forward(w1, b1, w2, b2, wl, bl, *, pool_kernel, dilation, S, B, L_in):
    """One-time weight prep; returns a jitted forward(xs) -> (B, O).

    xs: (S, B, C_in, L_in); w1: (H0, C_in, K1); w2: (H1, H0, K2);
    wl: (O, H1 * Lp2).  Weight-norm is assumed already folded into w1/w2.
    """
    H0, C_in, K1 = w1.shape
    H1, H0b, K2 = w2.shape
    assert H0b == H0
    O, F = wl.shape
    d1, d2 = dilation
    p1, p2 = pool_kernel

    L1 = L_in - (K1 - 1) * d1
    Lp1 = L1 // p1
    L1p = Lp1 * p1            # conv1 outputs past L1p are dropped by pool1
    L_cat = S * Lp1
    L2 = L_cat - (K2 - 1) * d2
    Lp2 = L2 // p2
    L2p = Lp2 * p2            # conv2 outputs past L2p are dropped by pool2
    assert F == H1 * Lp2, "linear in_features (conv_seq_len) mismatch"

    # ---- lane-group size: pack batches onto lanes, target the 128-wide vreg
    B_g = max(1, _LANE // max(H0, H1))
    B_g = min(B_g, B)
    G = -(-B // B_g)          # number of batch groups == grid size
    Bp = G * B_g

    f32, bf16 = jnp.float32, jnp.bfloat16
    eye = jnp.eye(B_g, dtype=f32)

    # Block-diagonal (bounded at B_g, never O(B^2)) conv weights: per-tap for
    # conv1, taps folded into the contraction for conv2.  Built ONCE here.
    bdw1 = jnp.stack([jnp.kron(eye, w1[:, :, k].T) for k in range(K1)],
                     axis=0).astype(bf16)               # (K1, Bg*C, Bg*H0)
    bdw2 = jnp.stack([jnp.kron(eye, w2[:, :, k].T) for k in range(K2)],
                     axis=0).reshape(K2 * B_g * H0, B_g * H1).astype(bf16)
    b1row = jnp.tile(b1, B_g).reshape(1, B_g * H0).astype(f32)
    b2row = jnp.tile(b2, B_g).reshape(1, B_g * H1).astype(f32)

    # Linear head (channel-major flatten order), tiled over the lane group.
    wlt = jnp.tile(jnp.transpose(wl.reshape(O, H1, Lp2), (0, 2, 1)),
                   (1, 1, B_g)).astype(f32)             # (O, Lp2, Bg*H1)
    rsel = jnp.kron(eye, jnp.ones((H1, 1), f32))        # (Bg*H1, Bg)
    blrow = jnp.tile(bl.reshape(O, 1), (1, B_g)).astype(f32)   # (O, Bg)

    kernel = _make_kernel(S=S, L_in=L_in, L1p=L1p, Lp1=Lp1, L2p=L2p, Lp2=Lp2,
                          p1=p1, p2=p2, d1=d1, d2=d2, K1=K1, K2=K2, O=O)

    # All blocks are full-array on their last two dims (only the leading
    # group axis is blocked), so the (8,128) BlockSpec rule is always met.
    grid_spec = pltpu.PrefetchScalarGridSpec(
        num_scalar_prefetch=0,
        grid=(G,),
        in_specs=[
            pl.BlockSpec((1, S * L_in, B_g * C_in), lambda g: (g, 0, 0)),
            pl.BlockSpec((K1, B_g * C_in, B_g * H0), lambda g: (0, 0, 0)),
            pl.BlockSpec((1, B_g * H0), lambda g: (0, 0)),
            pl.BlockSpec((K2 * B_g * H0, B_g * H1), lambda g: (0, 0)),
            pl.BlockSpec((1, B_g * H1), lambda g: (0, 0)),
            pl.BlockSpec((O, Lp2, B_g * H1), lambda g: (0, 0, 0)),
            pl.BlockSpec((B_g * H1, B_g), lambda g: (0, 0)),
            pl.BlockSpec((O, B_g), lambda g: (0, 0)),
        ],
        out_specs=pl.BlockSpec((1, O, B_g), lambda g: (g, 0, 0)),
        scratch_shapes=[
            pltpu.VMEM((S * L1p, B_g * H0), f32),       # conv1+relu output
            pltpu.VMEM((L2p, B_g * H1), f32),           # conv2+relu output
        ],
    )
    # TODO(synk): at much larger L_in, also tile the per-group activations
    # over time and re-derive vmem_limit_bytes for v7x's 64 MiB VMEM.
    call = pl.pallas_call(
        kernel,
        out_shape=jax.ShapeDtypeStruct((G, O, B_g), f32),
        grid_spec=grid_spec,
        compiler_params=pltpu.CompilerParams(
            dimension_semantics=("parallel",)),         # 2 TCs on v7x
    )

    @jax.jit
    def forward(xs):                                    # xs: (S, B, C, L_in)
        if Bp != B:
            xs = jnp.pad(xs, ((0, 0), (0, Bp - B), (0, 0), (0, 0)))
        x5 = xs.reshape(S, G, B_g, C_in, L_in)
        # x_l[g, s*L_in + t, b*C + c] = xs[s, g*B_g + b, c, t]
        x_l = jnp.transpose(x5, (1, 0, 4, 2, 3)).reshape(
            G, S * L_in, B_g * C_in).astype(bf16)
        out_g = call(x_l, bdw1, b1row, bdw2, b2row, wlt, rsel, blrow)
        out = jnp.transpose(out_g, (1, 0, 2)).reshape(O, Bp)[:, :B]
        return out.T                                    # (B, O)

    return forward


# ----------------------------- pure-JAX reference ---------------------------

def _conv1d_ref(x, w, b, d):
    y = jax.lax.conv_general_dilated(
        x, w, window_strides=(1,), padding="VALID", rhs_dilation=(d,),
        dimension_numbers=("NCH", "OIH", "NCH"),
        precision=jax.lax.Precision.HIGHEST)
    return y + b[None, :, None]


def _maxpool1d_ref(x, p):
    B, C, L = x.shape
    Lp = L // p
    return jnp.max(x[:, :, : Lp * p].reshape(B, C, Lp, p), axis=-1)


def reference(xs, w1, b1, w2, b2, wl, bl, *, pool_kernel, dilation):
    S = xs.shape[0]
    feats = [
        _maxpool1d_ref(
            jnp.maximum(_conv1d_ref(xs[s], w1, b1, dilation[0]), 0.0),
            pool_kernel[0])
        for s in range(S)
    ]
    cat = jnp.concatenate(feats, axis=2)
    p2 = _maxpool1d_ref(
        jnp.maximum(_conv1d_ref(cat, w2, b2, dilation[1]), 0.0),
        pool_kernel[1])
    flat = p2.reshape(p2.shape[0], -1)
    l1 = jnp.dot(flat, wl.T, precision=jax.lax.Precision.HIGHEST) + bl[None, :]
    return jax.nn.sigmoid(l1)


# ---------------------------------- main ------------------------------------

if __name__ == "__main__":
    # module config (small, consistent with HierarchicalCNN1d.__init__)
    input_size = 4
    hidden_size = (8, 8)
    conv_kernel = (3, 3)
    pool_kernel = (2, 2)
    dilation = (1, 1)
    output_size = 1
    S, B, L_in = 2, 2, 18                      # 2 sequences per subject

    L1 = L_in - (conv_kernel[0] - 1) * dilation[0]     # 16
    Lp1 = L1 // pool_kernel[0]                         # 8
    L2 = S * Lp1 - (conv_kernel[1] - 1) * dilation[1]  # 14
    Lp2 = L2 // pool_kernel[1]                         # 7
    conv_seq_len = hidden_size[1] * Lp2                # 56 (Linear in_features)

    key = jax.random.PRNGKey(0)
    ks = jax.random.split(key, 9)
    xs = jax.random.normal(ks[0], (S, B, input_size, L_in), jnp.float32)

    # deterministic weight-norm parameterisation: w = g * v / ||v||  (dim=0)
    v1 = 0.3 * jax.random.normal(
        ks[1], (hidden_size[0], input_size, conv_kernel[0]), jnp.float32)
    g1 = 1.0 + 0.1 * jax.random.normal(ks[2], (hidden_size[0], 1, 1), jnp.float32)
    w1 = g1 * v1 / jnp.sqrt(jnp.sum(v1 ** 2, axis=(1, 2), keepdims=True))
    b1 = 0.1 * jax.random.normal(ks[3], (hidden_size[0],), jnp.float32)

    v2 = 0.3 * jax.random.normal(
        ks[4], (hidden_size[1], hidden_size[0], conv_kernel[1]), jnp.float32)
    g2 = 1.0 + 0.1 * jax.random.normal(ks[5], (hidden_size[1], 1, 1), jnp.float32)
    w2 = g2 * v2 / jnp.sqrt(jnp.sum(v2 ** 2, axis=(1, 2), keepdims=True))
    b2 = 0.1 * jax.random.normal(ks[6], (hidden_size[1],), jnp.float32)

    wl = 0.2 * jax.random.normal(ks[7], (output_size, conv_seq_len), jnp.float32)
    bl = 0.1 * jax.random.normal(ks[8], (output_size,), jnp.float32)

    forward = build_forward(w1, b1, w2, b2, wl, bl,
                            pool_kernel=pool_kernel, dilation=dilation,
                            S=S, B=B, L_in=L_in)
    out = jax.block_until_ready(forward(xs))

    ref = reference(xs, w1, b1, w2, b2, wl, bl,
                    pool_kernel=pool_kernel, dilation=dilation)
    assert out.shape == (B, output_size)
    # bf16 matmul operands (f32 accumulation) vs the f32 HIGHEST reference.
    assert jnp.allclose(out, ref, atol=2e-2, rtol=2e-2), (out, ref)
    print("KERNEL_OK")
</pallas_src>

<mosaic_0001>
module attributes {stable_mosaic.version = 11 : i64} {
  func.func @kernel(%arg0: i32, %arg1: memref<1x36x8xbf16, #tpu.memory_space<vmem>>, %arg2: memref<3x8x16xbf16, #tpu.memory_space<vmem>>, %arg3: memref<1x16xf32, #tpu.memory_space<vmem>>, %arg4: memref<48x16xbf16, #tpu.memory_space<vmem>>, %arg5: memref<1x16xf32, #tpu.memory_space<vmem>>, %arg6: memref<1x7x16xf32, #tpu.memory_space<vmem>>, %arg7: memref<16x2xf32, #tpu.memory_space<vmem>>, %arg8: memref<1x2xf32, #tpu.memory_space<vmem>>, %arg9: memref<1x1x2xf32, #tpu.memory_space<vmem>>, %arg10: memref<32x16xf32, #tpu.memory_space<vmem>>, %arg11: memref<14x16xf32, #tpu.memory_space<vmem>>) attributes {dimension_semantics = [#tpu.dimension_semantics<parallel>], iteration_bounds = array<i64: 1>, scalar_prefetch = 0 : i64, scratch_operands = 2 : i64, tpu.core_type = #tpu.core_type<tc>, window_params = [{transform_indices = @transform_0, window_bounds = array<i64: 1, 36, 8>}, {pipeline_mode = #tpu.pipeline_mode<synchronous>, transform_indices = @transform_1, window_bounds = array<i64: 3, 8, 16>}, {pipeline_mode = #tpu.pipeline_mode<synchronous>, transform_indices = @transform_2, window_bounds = array<i64: 1, 16>}, {pipeline_mode = #tpu.pipeline_mode<synchronous>, transform_indices = @transform_3, window_bounds = array<i64: 48, 16>}, {pipeline_mode = #tpu.pipeline_mode<synchronous>, transform_indices = @transform_4, window_bounds = array<i64: 1, 16>}, {pipeline_mode = #tpu.pipeline_mode<synchronous>, transform_indices = @transform_5, window_bounds = array<i64: 1, 7, 16>}, {pipeline_mode = #tpu.pipeline_mode<synchronous>, transform_indices = @transform_6, window_bounds = array<i64: 16, 2>}, {pipeline_mode = #tpu.pipeline_mode<synchronous>, transform_indices = @transform_7, window_bounds = array<i64: 1, 2>}, {transform_indices = @transform_8, window_bounds = array<i64: 1, 1, 2>}]} {
    %c0 = arith.constant 0 : index
    %c0_0 = arith.constant 0 : index
    %c0_1 = arith.constant 0 : index
    %0 = vector.load %arg1[%c0, %c0_0, %c0_1] : memref<1x36x8xbf16, #tpu.memory_space<vmem>>, vector<1x36x8xbf16>
    %1 = vector.shape_cast %0 : vector<1x36x8xbf16> to vector<36x8xbf16>
    %c0_2 = arith.constant 0 : index
    %c0_3 = arith.constant 0 : index
    %2 = vector.load %arg3[%c0_2, %c0_3] : memref<1x16xf32, #tpu.memory_space<vmem>>, vector<1x16xf32>
    %3 = vector.extract_strided_slice %1 {offsets = [0, 0], sizes = [16, 8], strides = [1, 1]} : vector<36x8xbf16> to vector<16x8xbf16>
    %c0_4 = arith.constant 0 : index
    %c0_5 = arith.constant 0 : index
    %c0_6 = arith.constant 0 : index
    %4 = vector.load %arg2[%c0_4, %c0_5, %c0_6] : memref<3x8x16xbf16, #tpu.memory_space<vmem>>, vector<1x8x16xbf16>
    %5 = vector.shape_cast %4 : vector<1x8x16xbf16> to vector<8x16xbf16>
    %cst = arith.constant dense<0.000000e+00> : vector<16x16xf32>
    %6 = tpu.matmul %3, %5, %cst {dimension_numbers = #tpu.dot_dimension_numbers<[1], [0], [0], [1], [0, 0, 1, 1], [], []>} : vector<16x8xbf16>, vector<8x16xbf16>, vector<16x16xf32> -> vector<16x16xf32>
    %7 = vector.extract_strided_slice %1 {offsets = [1, 0], sizes = [16, 8], strides = [1, 1]} : vector<36x8xbf16> to vector<16x8xbf16>
    %c1 = arith.constant 1 : index
    %c0_7 = arith.constant 0 : index
    %c0_8 = arith.constant 0 : index
    %8 = vector.load %arg2[%c1, %c0_7, %c0_8] : memref<3x8x16xbf16, #tpu.memory_space<vmem>>, vector<1x8x16xbf16>
    %9 = vector.shape_cast %8 : vector<1x8x16xbf16> to vector<8x16xbf16>
    %cst_9 = arith.constant dense<0.000000e+00> : vector<16x16xf32>
    %10 = tpu.matmul %7, %9, %cst_9 {dimension_numbers = #tpu.dot_dimension_numbers<[1], [0], [0], [1], [0, 0, 1, 1], [], []>} : vector<16x8xbf16>, vector<8x16xbf16>, vector<16x16xf32> -> vector<16x16xf32>
    %11 = arith.addf %6, %10 : vector<16x16xf32>
    %12 = vector.extract_strided_slice %1 {offsets = [2, 0], sizes = [16, 8], strides = [1, 1]} : vector<36x8xbf16> to vector<16x8xbf16>
    %c2 = arith.constant 2 : index
    %c0_10 = arith.constant 0 : index
    %c0_11 = arith.constant 0 : index
    %13 = vector.load %arg2[%c2, %c0_10, %c0_11] : memref<3x8x16xbf16, #tpu.memory_space<vmem>>, vector<1x8x16xbf16>
    %14 = vector.shape_cast %13 : vector<1x8x16xbf16> to vector<8x16xbf16>
    %cst_12 = arith.constant dense<0.000000e+00> : vector<16x16xf32>
    %15 = tpu.matmul %12, %14, %cst_12 {dimension_numbers = #tpu.dot_dimension_numbers<[1], [0], [0], [1], [0, 0, 1, 1], [], []>} : vector<16x8xbf16>, vector<8x16xbf16>, vector<16x16xf32> -> vector<16x16xf32>
    %16 = arith.addf %11, %15 : vector<16x16xf32>
    %17 = vector.broadcast %2 : vector<1x16xf32> to vector<16x16xf32>
    %18 = arith.addf %16, %17 : vector<16x16xf32>
    %cst_13 = arith.constant 0.000000e+00 : f32
    %19 = vector.broadcast %cst_13 : f32 to vector<16x16xf32>
    %20 = arith.maximumf %18, %19 : vector<16x16xf32>
    %c0_14 = arith.constant 0 : index
    %c0_15 = arith.constant 0 : index
    %21 = vector.load %arg10[%c0_14, %c0_15] : memref<32x16xf32, #tpu.memory_space<vmem>>, vector<16x16xf32>
    tpu.vector_store %arg10[%c0_14, %c0_15], %20 {strides = array<i32>} : memref<32x16xf32, #tpu.memory_space<vmem>>, vector<16x16xf32>,
    %22 = vector.extract_strided_slice %1 {offsets = [18, 0], sizes = [16, 8], strides = [1, 1]} : vector<36x8xbf16> to vector<16x8xbf16>
    %c0_16 = arith.constant 0 : index
    %c0_17 = arith.constant 0 : index
    %c0_18 = arith.constant 0 : index
    %23 = vector.load %arg2[%c0_16, %c0_17, %c0_18] : memref<3x8x16xbf16, #tpu.memory_space<vmem>>, vector<1x8x16xbf16>
    %24 = vector.shape_cast %23 : vector<1x8x16xbf16> to vector<8x16xbf16>
    %cst_19 = arith.constant dense<0.000000e+00> : vector<16x16xf32>
    %25 = tpu.matmul %22, %24, %cst_19 {dimension_numbers = #tpu.dot_dimension_numbers<[1], [0], [0], [1], [0, 0, 1, 1], [], []>} : vector<16x8xbf16>, vector<8x16xbf16>, vector<16x16xf32> -> vector<16x16xf32>
    %26 = vector.extract_strided_slice %1 {offsets = [19, 0], sizes = [16, 8], strides = [1, 1]} : vector<36x8xbf16> to vector<16x8xbf16>
    %c1_20 = arith.constant 1 : index
    %c0_21 = arith.constant 0 : index
    %c0_22 = arith.constant 0 : index
    %27 = vector.load %arg2[%c1_20, %c0_21, %c0_22] : memref<3x8x16xbf16, #tpu.memory_space<vmem>>, vector<1x8x16xbf16>
    %28 = vector.shape_cast %27 : vector<1x8x16xbf16> to vector<8x16xbf16>
    %cst_23 = arith.constant dense<0.000000e+00> : vector<16x16xf32>
    %29 = tpu.matmul %26, %28, %cst_23 {dimension_numbers = #tpu.dot_dimension_numbers<[1], [0], [0], [1], [0, 0, 1, 1], [], []>} : vector<16x8xbf16>, vector<8x16xbf16>, vector<16x16xf32> -> vector<16x16xf32>
    %30 = arith.addf %25, %29 : vector<16x16xf32>
    %31 = vector.extract_strided_slice %1 {offsets = [20, 0], sizes = [16, 8], strides = [1, 1]} : vector<36x8xbf16> to vector<16x8xbf16>
    %c2_24 = arith.constant 2 : index
    %c0_25 = arith.constant 0 : index
    %c0_26 = arith.constant 0 : index
    %32 = vector.load %arg2[%c2_24, %c0_25, %c0_26] : memref<3x8x16xbf16, #tpu.memory_space<vmem>>, vector<1x8x16xbf16>
    %33 = vector.shape_cast %32 : vector<1x8x16xbf16> to vector<8x16xbf16>
    %cst_27 = arith.constant dense<0.000000e+00> : vector<16x16xf32>
    %34 = tpu.matmul %31, %33, %cst_27 {dimension_numbers = #tpu.dot_dimension_numbers<[1], [0], [0], [1], [0, 0, 1, 1], [], []>} : vector<16x8xbf16>, vector<8x16xbf16>, vector<16x16xf32> -> vector<16x16xf32>
    %35 = arith.addf %30, %34 : vector<16x16xf32>
    %36 = vector.broadcast %2 : vector<1x16xf32> to vector<16x16xf32>
    %37 = arith.addf %35, %36 : vector<16x16xf32>
    %cst_28 = arith.constant 0.000000e+00 : f32
    %38 = vector.broadcast %cst_28 : f32 to vector<16x16xf32>
    %39 = arith.maximumf %37, %38 : vector<16x16xf32>
    %c16 = arith.constant 16 : index
    %c0_29 = arith.constant 0 : index
    %40 = vector.load %arg10[%c16, %c0_29] : memref<32x16xf32, #tpu.memory_space<vmem>>, vector<16x16xf32>
    tpu.vector_store %arg10[%c16, %c0_29], %39 {strides = array<i32>} : memref<32x16xf32, #tpu.memory_space<vmem>>, vector<16x16xf32>,
    %c0_30 = arith.constant 0 : index
    %c0_31 = arith.constant 0 : index
    %41 = tpu.strided_load %arg10[%c0_30, %c0_31] {strides = array<i32: 2, 1>} : memref<32x16xf32, #tpu.memory_space<vmem>>, vector<16x16xf32>
    %c1_32 = arith.constant 1 : index
    %c0_33 = arith.constant 0 : index
    %42 = tpu.strided_load %arg10[%c1_32, %c0_33] {strides = array<i32: 2, 1>} : memref<32x16xf32, #tpu.memory_space<vmem>>, vector<16x16xf32>
    %43 = arith.maximumf %41, %42 : vector<16x16xf32>
    %44 = vector.extract_strided_slice %43 {offsets = [0, 0], sizes = [14, 16], strides = [1, 1]} : vector<16x16xf32> to vector<14x16xf32>
    %45 = vector.extract_strided_slice %43 {offsets = [1, 0], sizes = [14, 16], strides = [1, 1]} : vector<16x16xf32> to vector<14x16xf32>
    %46 = vector.extract_strided_slice %43 {offsets = [2, 0], sizes = [14, 16], strides = [1, 1]} : vector<16x16xf32> to vector<14x16xf32>
    %47 = tpu.concatenate %44, %45, %46 in 1 : vector<14x16xf32>, vector<14x16xf32>, vector<14x16xf32> -> vector<14x48xf32>
    %48 = arith.truncf %47 : vector<14x48xf32> to vector<14x48xbf16>
    %c0_34 = arith.constant 0 : index
    %c0_35 = arith.constant 0 : index
    %49 = vector.load %arg4[%c0_34, %c0_35] : memref<48x16xbf16, #tpu.memory_space<vmem>>, vector<48x16xbf16>
    %cst_36 = arith.constant dense<0.000000e+00> : vector<14x16xf32>
    %50 = tpu.matmul %48, %49, %cst_36 {dimension_numbers = #tpu.dot_dimension_numbers<[1], [0], [0], [1], [0, 0, 1, 1], [], []>} : vector<14x48xbf16>, vector<48x16xbf16>, vector<14x16xf32> -> vector<14x16xf32>
    %c0_37 = arith.constant 0 : index
    %c0_38 = arith.constant 0 : index
    %51 = vector.load %arg5[%c0_37, %c0_38] : memref<1x16xf32, #tpu.memory_space<vmem>>, vector<1x16xf32>
    %52 = vector.broadcast %51 : vector<1x16xf32> to vector<14x16xf32>
    %53 = arith.addf %50, %52 : vector<14x16xf32>
    %cst_39 = arith.constant 0.000000e+00 : f32
    %54 = vector.broadcast %cst_39 : f32 to vector<14x16xf32>
    %55 = arith.maximumf %53, %54 : vector<14x16xf32>
    %c0_40 = arith.constant 0 : index
    %c0_41 = arith.constant 0 : index
    %56 = vector.load %arg11[%c0_40, %c0_41] : memref<14x16xf32, #tpu.memory_space<vmem>>, vector<14x16xf32>
    tpu.vector_store %arg11[%c0_40, %c0_41], %55 {strides = array<i32>} : memref<14x16xf32, #tpu.memory_space<vmem>>, vector<14x16xf32>,
    %c0_42 = arith.constant 0 : index
    %c0_43 = arith.constant 0 : index
    %57 = tpu.strided_load %arg11[%c0_42, %c0_43] {strides = array<i32: 2, 1>} : memref<14x16xf32, #tpu.memory_space<vmem>>, vector<7x16xf32>
    %c1_44 = arith.constant 1 : index
    %c0_45 = arith.constant 0 : index
    %58 = tpu.strided_load %arg11[%c1_44, %c0_45] {strides = array<i32: 2, 1>} : memref<14x16xf32, #tpu.memory_space<vmem>>, vector<7x16xf32>
    %59 = arith.maximumf %57, %58 : vector<7x16xf32>
    %c0_46 = arith.constant 0 : index
    %c0_47 = arith.constant 0 : index
    %c0_48 = arith.constant 0 : index
    %60 = vector.load %arg6[%c0_46, %c0_47, %c0_48] : memref<1x7x16xf32, #tpu.memory_space<vmem>>, vector<1x7x16xf32>
    %c0_49 = arith.constant 0 : index
    %c0_50 = arith.constant 0 : index
    %61 = vector.load %arg7[%c0_49, %c0_50] : memref<16x2xf32, #tpu.memory_space<vmem>>, vector<16x2xf32>
    %cst_51 = arith.constant 1.000000e+00 : f32
    %62 = vector.broadcast %cst_51 : f32 to vector<1x7xf32>
    %63 = vector.shape_cast %60 : vector<1x7x16xf32> to vector<7x16xf32>
    %64 = arith.mulf %59, %63 : vector<7x16xf32>
    %cst_52 = arith.constant dense<0.000000e+00> : vector<1x16xf32>
    %65 = tpu.matmul %62, %64, %cst_52 {dimension_numbers = #tpu.dot_dimension_numbers<[1], [0], [0], [1], [0, 0, 1, 1], [], []>} : vector<1x7xf32>, vector<7x16xf32>, vector<1x16xf32> -> vector<1x16xf32>
    %cst_53 = arith.constant dense<0.000000e+00> : vector<1x2xf32>
    %66 = tpu.matmul %65, %61, %cst_53 {dimension_numbers = #tpu.dot_dimension_numbers<[1], [0], [0], [1], [0, 0, 1, 1], [], []>} : vector<1x16xf32>, vector<16x2xf32>, vector<1x2xf32> -> vector<1x2xf32>
    %c0_54 = arith.constant 0 : index
    %c0_55 = arith.constant 0 : index
    %67 = vector.load %arg8[%c0_54, %c0_55] : memref<1x2xf32, #tpu.memory_space<vmem>>, vector<1x2xf32>
    %68 = arith.addf %66, %67 : vector<1x2xf32>
    %cst_56 = arith.constant 0.000000e+00 : f32
    %69 = vector.broadcast %cst_56 : f32 to vector<1x2xf32>
    %70 = arith.subf %69, %68 : vector<1x2xf32>
    %71 = math.exp %70 : vector<1x2xf32>
    %cst_57 = arith.constant 1.000000e+00 : f32
    %72 = vector.broadcast %cst_57 : f32 to vector<1x2xf32>
    %73 = arith.addf %72, %71 : vector<1x2xf32>
    %74 = tpu.reciprocal %73 : vector<1x2xf32> -> vector<1x2xf32>
    %c0_58 = arith.constant 0 : index
    %c0_59 = arith.constant 0 : index
    %c0_60 = arith.constant 0 : index
    %75 = vector.load %arg9[%c0_58, %c0_59, %c0_60] : memref<1x1x2xf32, #tpu.memory_space<vmem>>, vector<1x1x2xf32>
    %76 = vector.shape_cast %75 : vector<1x1x2xf32> to vector<1x2xf32>
    %77 = vector.shape_cast %74 : vector<1x2xf32> to vector<1x1x2xf32>
    tpu.vector_store %arg9[%c0_58, %c0_59, %c0_60], %77 {strides = array<i32>} : memref<1x1x2xf32, #tpu.memory_space<vmem>>, vector<1x1x2xf32>,
    return
  }
  func.func @transform_0(%arg0: i32) -> (i32, i32, i32) {
    %c0_i32 = arith.constant 0 : i32
    %c0_i32_0 = arith.constant 0 : i32
    %c0_i32_1 = arith.constant 0 : i32
    return %arg0, %c0_i32, %c0_i32_0 : i32, i32, i32
  }
  func.func @transform_1(%arg0: i32) -> (i32, i32, i32) {
    %c0_i32 = arith.constant 0 : i32
    %c0_i32_0 = arith.constant 0 : i32
    %c0_i32_1 = arith.constant 0 : i32
    %c0_i32_2 = arith.constant 0 : i32
    return %c0_i32, %c0_i32_0, %c0_i32_1 : i32, i32, i32
  }
  func.func @transform_2(%arg0: i32) -> (i32, i32) {
    %c0_i32 = arith.constant 0 : i32
    %c0_i32_0 = arith.constant 0 : i32
    %c0_i32_1 = arith.constant 0 : i32
    return %c0_i32, %c0_i32_0 : i32, i32
  }
  func.func @transform_3(%arg0: i32) -> (i32, i32) {
    %c0_i32 = arith.constant 0 : i32
    %c0_i32_0 = arith.constant 0 : i32
    %c0_i32_1 = arith.constant 0 : i32
    return %c0_i32, %c0_i32_0 : i32, i32
  }
  func.func @transform_4(%arg0: i32) -> (i32, i32) {
    %c0_i32 = arith.constant 0 : i32
    %c0_i32_0 = arith.constant 0 : i32
    %c0_i32_1 = arith.constant 0 : i32
    return %c0_i32, %c0_i32_0 : i32, i32
  }
  func.func @transform_5(%arg0: i32) -> (i32, i32, i32) {
    %c0_i32 = arith.constant 0 : i32
    %c0_i32_0 = arith.constant 0 : i32
    %c0_i32_1 = arith.constant 0 : i32
    %c0_i32_2 = arith.constant 0 : i32
    return %c0_i32, %c0_i32_0, %c0_i32_1 : i32, i32, i32
  }
  func.func @transform_6(%arg0: i32) -> (i32, i32) {
    %c0_i32 = arith.constant 0 : i32
    %c0_i32_0 = arith.constant 0 : i32
    %c0_i32_1 = arith.constant 0 : i32
    return %c0_i32, %c0_i32_0 : i32, i32
  }
  func.func @transform_7(%arg0: i32) -> (i32, i32) {
    %c0_i32 = arith.constant 0 : i32
    %c0_i32_0 = arith.constant 0 : i32
    %c0_i32_1 = arith.constant 0 : i32
    return %c0_i32, %c0_i32_0 : i32, i32
  }
  func.func @transform_8(%arg0: i32) -> (i32, i32, i32) {
    %c0_i32 = arith.constant 0 : i32
    %c0_i32_0 = arith.constant 0 : i32
    %c0_i32_1 = arith.constant 0 : i32
    return %arg0, %c0_i32, %c0_i32_0 : i32, i32, i32
  }
}

</mosaic_0001>

<llo_original>
// kernel: forward.1
$region0: #{forward.1}
  #allocation0 [shape = 'u32[]', space=smem, size = 0x4, offset = 0x4, fixed_abs, tag = 'smem constant byte address 0x4 - core index']
  #allocation1 [shape = 'u32[144,128]{1,0:T(1,128)}', space=vmem, size = 0x12000, scoped, tag = 'internal scratch']
  #allocation2 [shape = 'f32[32,16]{1,0:T(8,128)}', space=vmem, size = 0x4000, scoped, tag = 'scratch operand']
  #allocation3 [shape = 'f32[14,16]{1,0:T(8,128)}', space=vmem, size = 0x2000, scoped, tag = 'scratch operand']
  %s0 = inlined_call_operand.vmem [shape: bf16[1,36,8], index: 0, kind: input, shape index: {}]
  %s1 = inlined_call_operand.vmem [shape: bf16[3,8,16], index: 1, kind: input, shape index: {}]
  %s2 = inlined_call_operand.vmem [shape: f32[1,16], index: 2, kind: input, shape index: {}]
  %s3 = inlined_call_operand.vmem [shape: bf16[48,16], index: 3, kind: input, shape index: {}]
  %s4 = inlined_call_operand.vmem [shape: f32[1,16], index: 4, kind: input, shape index: {}]
  %s5 = inlined_call_operand.vmem [shape: f32[1,7,16], index: 5, kind: input, shape index: {}]
  %s6 = inlined_call_operand.vmem [shape: f32[16,2], index: 6, kind: input, shape index: {}]
  %s7 = inlined_call_operand.vmem [shape: f32[1,2], index: 7, kind: input, shape index: {}]
  %s8 = inlined_call_operand.hbm [shape: f32[1,1,2], index: 8, kind: output, shape index: {}]
  %s9 = sld [smem:[#allocation0]]
  $region42: #{forward.1} parent=0
    _
  %s11 = ssub.s32 1, %s9
  %s12 = scalar_select 0, %s11, %s9
  $region1: #{forward.1} parent=0
    #allocation4 [shape = 'u8[512]{0}', space=vmem, size = 0x400, scoped, tag = 'output window, operand 0, single buffered']
    #allocation5 [shape = 's32[1]{0}', space=sflag, size = 0x4, scoped, tag = 'scoped memory for forward.1']
    %13 = vsyncpa [#allocation5], 0
    // Predicated region
    $region2: #{forward.1} parent=1 // pred_check
      _
    $region3: #{forward.1} parent=1 // pred_check_branch
      %15 = sbr.rel (0) target = $region5
    $region4: #{forward.1} parent=1 // pred_region
      _
    $region5: #{forward.1} parent=1 // pred_fallthru
      _
    // Predicated region
    $region6: #{forward.1} parent=1 // pred_check
      _
    $region7: #{forward.1} parent=1 // pred_check_branch
      %17 = sbr.rel (0) target = $region9
    $region8: #{forward.1} parent=1 // pred_region
      _
    $region9: #{forward.1} parent=1 // pred_fallthru
      _
    // Predicated region
    $region10: #{forward.1} parent=1 // pred_check
      _
    $region11: #{forward.1} parent=1 // pred_check_branch
      %19 = sbr.rel (0) target = $region13
    $region12: #{forward.1} parent=1 // pred_region
      _
    $region13: #{forward.1} parent=1 // pred_fallthru
      _
    // Predicated region
    $region14: #{forward.1} parent=1 // pred_check
      _
    $region15: #{forward.1} parent=1 // pred_check_branch
      %21 = sbr.rel (0) target = $region17
    $region16: #{forward.1} parent=1 // pred_region
      _
    $region17: #{forward.1} parent=1 // pred_fallthru
      _
    // Predicated region
    $region18: #{forward.1} parent=1 // pred_check
      _
    $region19: #{forward.1} parent=1 // pred_check_branch
      %23 = sbr.rel (0) target = $region21
    $region20: #{forward.1} parent=1 // pred_region
      _
    $region21: #{forward.1} parent=1 // pred_fallthru
      _
    // Predicated region
    $region22: #{forward.1} parent=1 // pred_check
      _
    $region23: #{forward.1} parent=1 // pred_check_branch
      %25 = sbr.rel (0) target = $region25
    $region24: #{forward.1} parent=1 // pred_region
      _
    $region25: #{forward.1} parent=1 // pred_fallthru
      _
    // Predicated region
    $region26: #{forward.1} parent=1 // pred_check
      _
    $region27: #{forward.1} parent=1 // pred_check_branch
      %27 = sbr.rel (0) target = $region29
    $region28: #{forward.1} parent=1 // pred_region
      _
    $region29: #{forward.1} parent=1 // pred_fallthru
      _
    // Predicated region
    $region30: #{forward.1} parent=1 // pred_check
      _
    $region31: #{forward.1} parent=1 // pred_check_branch
      %29 = sbr.rel (0) target = $region33
    $region32: #{forward.1} parent=1 // pred_region
      _
    $region33: #{forward.1} parent=1 // pred_fallthru
      _
    %v31 = vld [vmem:[%s0] sm:$0xf]
    %v32 = vld [vmem:[%s0 + $0x4] sm:$0xf]
    %v33 = vld [vmem:[%s0 + $0x8] sm:$0xf]
    %v34 = vld [vmem:[%s0 + $0xc] sm:$0xf]
    %v35 = vld [vmem:[%s0 + $0x10] sm:$0x3]
    %v36 = vld [vmem:[%s2] sm:$0x1]
    %v37 = vld [vmem:[%s1] sm:$0xf]
    %s38 = scalar_lea.vmem %s1, 4
    %v39 = vld [vmem:[%s38] sm:$0xf]
    %v43 = vunpack.c.l.b16 %v31
    %v44 = vunpack.c.l.b16 %v32
    %v45 = vunpack.c.l.b16 %v33
    %v46 = vpack.c.b16 %v44, %v43
    %v47 = vpack.c.b16 %v45, %v45
    %vm48 = vsmask.f32 7424
    %v50 = vshrl.u32 %v46, 16
    %v52 = vshll.u32 %v46, 16
    %v54 = vrot.slane %v52, 1
    %v55 = vor.u32 %v50, %v54
    %v57 = vshll.u32 %v47, 16
    %v59 = vrot.slane %v57, 1
    %v60 = vsel %vm48, %v55, %v59
    %vm61 = vcmask 64512
    %v63 = vsel %vm61, %v60, 0
    %vm65 = vcmask 1043456
    %v67 = vsel %vm65, %v39, 0
    %69 = vmatprep.subr.bf16.mxu0 0
    %70 = vmatpush1.bf16.msra.mxu0 %v67
    %71 = vmatprep.subr.bf16.mxu0 0
    %72 = vmatpush1.bf16.msra.mxu0 0
    %73 = vmatprep.subr.bf16.mxu0 0
    %74 = vmatpush1.bf16.msra.mxu0 0
    %75 = vmatprep.subr.bf16.mxu0 0
    %76 = vmatpush1.bf16.msra.mxu0 0
    %77 = vmatprep.subr.bf16.mxu0 0
    %78 = vmatpush1.bf16.msra.mxu0 0
    %79 = vmatprep.subr.bf16.mxu0 0
    %80 = vmatpush1.bf16.msra.mxu0 0
    %81 = vmatprep.subr.bf16.mxu0 0
    %82 = vmatpush1.bf16.msra.mxu0 0
    %83 = vmatprep.subr.bf16.mxu0 0
    %84 = vmatpush1.bf16.msra.mxu0 0
    %85 = vmatprep.subr.bf16.mxu0 0
    %86 = vmatpush1.bf16.msra.mxu0 0
    %87 = vmatprep.subr.bf16.mxu0 0
    %88 = vmatpush1.bf16.msra.mxu0 0
    %89 = vmatprep.subr.bf16.mxu0 0
    %90 = vmatpush1.bf16.msra.mxu0 0
    %91 = vmatprep.subr.bf16.mxu0 0
    %92 = vmatpush1.bf16.msra.mxu0 0
    %93 = vmatprep.subr.bf16.mxu0 0
    %94 = vmatpush1.bf16.msra.mxu0 0
    %95 = vmatprep.subr.bf16.mxu0 0
    %96 = vmatpush1.bf16.msra.mxu0 0
    %97 = vmatprep.subr.bf16.mxu0 0
    %98 = vmatpush1.bf16.msra.mxu0 0
    %99 = vmatprep.subr.bf16.mxu0 0
    %100 = vmatpush1.bf16.msra.mxu0 0
    %101 = vmatprep.mubr.bf16.mxu0 0
    %102 = vmatmul.mubr.bf16.gmra.mrb[0].mxu0 %v63
    %v103 = vpop.f32.mrb[0].mxu0
    %v104 = vadd.f32 0.0, %v103
    %v105 = vpop.f32.mrb[0].mxu0
    %v106 = vpop.f32.mrb[0].mxu0
    %v107 = vadd.f32 0.0, %v106
    %v108 = vpop.f32.mrb[0].mxu0
    %109 = vdwg.mxu0
    %v110 = vsel %vm61, %v46, 0
    %v113 = vsel %vm65, %v37, 0
    %115 = vmatprep.subr.bf16.mxu0 0
    %116 = vmatpush1.bf16.msra.mxu0 %v113
    %117 = vmatprep.subr.bf16.mxu0 0
    %118 = vmatpush1.bf16.msra.mxu0 0
    %119 = vmatprep.subr.bf16.mxu0 0
    %120 = vmatpush1.bf16.msra.mxu0 0
    %121 = vmatprep.subr.bf16.mxu0 0
    %122 = vmatpush1.bf16.msra.mxu0 0
    %123 = vmatprep.subr.bf16.mxu0 0
    %124 = vmatpush1.bf16.msra.mxu0 0
    %125 = vmatprep.subr.bf16.mxu0 0
    %126 = vmatpush1.bf16.msra.mxu0 0
    %127 = vmatprep.subr.bf16.mxu0 0
    %128 = vmatpush1.bf16.msra.mxu0 0
    %129 = vmatprep.subr.bf16.mxu0 0
    %130 = vmatpush1.bf16.msra.mxu0 0
    %131 = vmatprep.subr.bf16.mxu0 0
    %132 = vmatpush1.bf16.msra.mxu0 0
    %133 = vmatprep.subr.bf16.mxu0 0
    %134 = vmatpush1.bf16.msra.mxu0 0
    %135 = vmatprep.subr.bf16.mxu0 0
    %136 = vmatpush1.bf16.msra.mxu0 0
    %137 = vmatprep.subr.bf16.mxu0 0
    %138 = vmatpush1.bf16.msra.mxu0 0
    %139 = vmatprep.subr.bf16.mxu0 0
    %140 = vmatpush1.bf16.msra.mxu0 0
    %141 = vmatprep.subr.bf16.mxu0 0
    %142 = vmatpush1.bf16.msra.mxu0 0
    %143 = vmatprep.subr.bf16.mxu0 0
    %144 = vmatpush1.bf16.msra.mxu0 0
    %145 = vmatprep.subr.bf16.mxu0 0
    %146 = vmatpush1.bf16.msra.mxu0 0
    %147 = vmatprep.mubr.bf16.mxu0 0
    %148 = vmatmul.mubr.bf16.gmra.mrb[0].mxu0 %v110
    %v149 = vpop.f32.mrb[0].mxu0
    %v150 = vadd.f32 %v104, %v149
    %v151 = vpop.f32.mrb[0].mxu0
    %v152 = vpop.f32.mrb[0].mxu0
    %v153 = vadd.f32 %v107, %v152
    %v154 = vpop.f32.mrb[0].mxu0
    %155 = vdwg.mxu0
    %s156 = scalar_lea.vmem %s1, 8
    %v157 = vld [vmem:[%s156] sm:$0xf]
    %vm158 = vcmask 1046528
    %v159 = vrot.slane %v46, 1
    %v160 = vrot.slane %v47, 1
    %v161 = vsel %vm158, %v159, %v160
    %v163 = vsel %vm61, %v161, 0
    %v166 = vsel %vm65, %v157, 0
    %168 = vmatprep.subr.bf16.mxu0 0
    %169 = vmatpush1.bf16.msra.mxu0 %v166
    %170 = vmatprep.subr.bf16.mxu0 0
    %171 = vmatpush1.bf16.msra.mxu0 0
    %172 = vmatprep.subr.bf16.mxu0 0
    %173 = vmatpush1.bf16.msra.mxu0 0
    %174 = vmatprep.subr.bf16.mxu0 0
    %175 = vmatpush1.bf16.msra.mxu0 0
    %176 = vmatprep.subr.bf16.mxu0 0
    %177 = vmatpush1.bf16.msra.mxu0 0
    %178 = vmatprep.subr.bf16.mxu0 0
    %179 = vmatpush1.bf16.msra.mxu0 0
    %180 = vmatprep.subr.bf16.mxu0 0
    %181 = vmatpush1.bf16.msra.mxu0 0
    %182 = vmatprep.subr.bf16.mxu0 0
    %183 = vmatpush1.bf16.msra.mxu0 0
    %184 = vmatprep.subr.bf16.mxu0 0
    %185 = vmatpush1.bf16.msra.mxu0 0
    %186 = vmatprep.subr.bf16.mxu0 0
    %187 = vmatpush1.bf16.msra.mxu0 0
    %188 = vmatprep.subr.bf16.mxu0 0
    %189 = vmatpush1.bf16.msra.mxu0 0
    %190 = vmatprep.subr.bf16.mxu0 0
    %191 = vmatpush1.bf16.msra.mxu0 0
    %192 = vmatprep.subr.bf16.mxu0 0
    %193 = vmatpush1.bf16.msra.mxu0 0
    %194 = vmatprep.subr.bf16.mxu0 0
    %195 = vmatpush1.bf16.msra.mxu0 0
    %196 = vmatprep.subr.bf16.mxu0 0
    %197 = vmatpush1.bf16.msra.mxu0 0
    %198 = vmatprep.subr.bf16.mxu0 0
    %199 = vmatpush1.bf16.msra.mxu0 0
    %200 = vmatprep.mubr.bf16.mxu0 0
    %201 = vmatmul.mubr.bf16.gmra.mrb[0].mxu0 %v163
    %v202 = vpop.f32.mrb[0].mxu0
    %v203 = vadd.f32 0.0, %v202
    %v204 = vpop.f32.mrb[0].mxu0
    %v205 = vpop.f32.mrb[0].mxu0
    %v206 = vadd.f32 0.0, %v205
    %v207 = vpop.f32.mrb[0].mxu0
    %208 = vdwg.mxu0
    %v209 = vadd.f32 %v150, %v203
    %v210 = vadd.f32 %v153, %v206
    %v212 = vlaneseq
    %v213 = vshrl.u32 %v212, 7
    %v214 = vsub.s32 0, %v213
    %v215 = vrot.slane %v36, %v214
    %v217 = vadd.f32 %v209, %v215
    %v218 = vadd.f32 %v210, %v215
    %v219 = vmax.f32 %v217, 0.0
    %v220 = vmax.f32 %v218, 0.0
    %vm221 = vcmask 130048
    %222 = vst.msk [vmem:[#allocation2] sm:$0xff] %vm221, %v219
    %223 = vst.msk [vmem:[#allocation2 + $0x8] sm:$0xff] %vm221, %v220
    %v224 = vld [vmem:[%s1] sm:$0xf]
    %v225 = vld [vmem:[%s38] sm:$0xf]
    %v228 = vunpack.c.l.b16 %v34
    %v229 = vunpack.c.l.b16 %v35
    %v230 = vpack.c.b16 %v228, %v45
    %v231 = vpack.c.b16 %v229, %v229
    %vm232 = vsmask.f32 6400
    %v234 = vshrl.u32 %v230, 16
    %v236 = vrot.slane %v234, 1
    %v237 = vshll.u32 %v230, 16
    %v239 = vrot.slane %v237, 2
    %v240 = vor.u32 %v236, %v239
    %v242 = vshrl.u32 %v231, 16
    %v244 = vrot.slane %v242, 1
    %v245 = vshll.u32 %v231, 16
    %v247 = vrot.slane %v245, 2
    %v248 = vor.u32 %v244, %v247
    %v249 = vsel %vm232, %v240, %v248
    %v251 = vsel %vm61, %v249, 0
    %v254 = vsel %vm65, %v225, 0
    %256 = vmatprep.subr.bf16.mxu0 0
    %257 = vmatpush1.bf16.msra.mxu0 %v254
    %258 = vmatprep.subr.bf16.mxu0 0
    %259 = vmatpush1.bf16.msra.mxu0 0
    %260 = vmatprep.subr.bf16.mxu0 0
    %261 = vmatpush1.bf16.msra.mxu0 0
    %262 = vmatprep.subr.bf16.mxu0 0
    %263 = vmatpush1.bf16.msra.mxu0 0
    %264 = vmatprep.subr.bf16.mxu0 0
    %265 = vmatpush1.bf16.msra.mxu0 0
    %266 = vmatprep.subr.bf16.mxu0 0
    %267 = vmatpush1.bf16.msra.mxu0 0
    %268 = vmatprep.subr.bf16.mxu0 0
    %269 = vmatpush1.bf16.msra.mxu0 0
    %270 = vmatprep.subr.bf16.mxu0 0
    %271 = vmatpush1.bf16.msra.mxu0 0
    %272 = vmatprep.subr.bf16.mxu0 0
    %273 = vmatpush1.bf16.msra.mxu0 0
    %274 = vmatprep.subr.bf16.mxu0 0
    %275 = vmatpush1.bf16.msra.mxu0 0
    %276 = vmatprep.subr.bf16.mxu0 0
    %277 = vmatpush1.bf16.msra.mxu0 0
    %278 = vmatprep.subr.bf16.mxu0 0
    %279 = vmatpush1.bf16.msra.mxu0 0
    %280 = vmatprep.subr.bf16.mxu0 0
    %281 = vmatpush1.bf16.msra.mxu0 0
    %282 = vmatprep.subr.bf16.mxu0 0
    %283 = vmatpush1.bf16.msra.mxu0 0
    %284 = vmatprep.subr.bf16.mxu0 0
    %285 = vmatpush1.bf16.msra.mxu0 0
    %286 = vmatprep.subr.bf16.mxu0 0
    %287 = vmatpush1.bf16.msra.mxu0 0
    %288 = vmatprep.mubr.bf16.mxu0 0
    %289 = vmatmul.mubr.bf16.gmra.mrb[0].mxu0 %v251
    %v290 = vpop.f32.mrb[0].mxu0
    %v291 = vadd.f32 0.0, %v290
    %v292 = vpop.f32.mrb[0].mxu0
    %v293 = vpop.f32.mrb[0].mxu0
    %v294 = vadd.f32 0.0, %v293
    %v295 = vpop.f32.mrb[0].mxu0
    %296 = vdwg.mxu0
    %v297 = vrot.slane %v230, 1
    %v298 = vrot.slane %v231, 1
    %v299 = vsel %vm158, %v297, %v298
    %v301 = vsel %vm61, %v299, 0
    %v304 = vsel %vm65, %v224, 0
    %306 = vmatprep.subr.bf16.mxu0 0
    %307 = vmatpush1.bf16.msra.mxu0 %v304
    %308 = vmatprep.subr.bf16.mxu0 0
    %309 = vmatpush1.bf16.msra.mxu0 0
    %310 = vmatprep.subr.bf16.mxu0 0
    %311 = vmatpush1.bf16.msra.mxu0 0
    %312 = vmatprep.subr.bf16.mxu0 0
    %313 = vmatpush1.bf16.msra.mxu0 0
    %314 = vmatprep.subr.bf16.mxu0 0
    %315 = vmatpush1.bf16.msra.mxu0 0
    %316 = vmatprep.subr.bf16.mxu0 0
    %317 = vmatpush1.bf16.msra.mxu0 0
    %318 = vmatprep.subr.bf16.mxu0 0
    %319 = vmatpush1.bf16.msra.mxu0 0
    %320 = vmatprep.subr.bf16.mxu0 0
    %321 = vmatpush1.bf16.msra.mxu0 0
    %322 = vmatprep.subr.bf16.mxu0 0
    %323 = vmatpush1.bf16.msra.mxu0 0
    %324 = vmatprep.subr.bf16.mxu0 0
    %325 = vmatpush1.bf16.msra.mxu0 0
    %326 = vmatprep.subr.bf16.mxu0 0
    %327 = vmatpush1.bf16.msra.mxu0 0
    %328 = vmatprep.subr.bf16.mxu0 0
    %329 = vmatpush1.bf16.msra.mxu0 0
    %330 = vmatprep.subr.bf16.mxu0 0
    %331 = vmatpush1.bf16.msra.mxu0 0
    %332 = vmatprep.subr.bf16.mxu0 0
    %333 = vmatpush1.bf16.msra.mxu0 0
    %334 = vmatprep.subr.bf16.mxu0 0
    %335 = vmatpush1.bf16.msra.mxu0 0
    %336 = vmatprep.subr.bf16.mxu0 0
    %337 = vmatpush1.bf16.msra.mxu0 0
    %338 = vmatprep.mubr.bf16.mxu0 0
    %339 = vmatmul.mubr.bf16.gmra.mrb[0].mxu0 %v301
    %v340 = vpop.f32.mrb[0].mxu0
    %v341 = vadd.f32 %v291, %v340
    %v342 = vpop.f32.mrb[0].mxu0
    %v343 = vpop.f32.mrb[0].mxu0
    %v344 = vadd.f32 %v294, %v343
    %v345 = vpop.f32.mrb[0].mxu0
    %346 = vdwg.mxu0
    %v347 = vld [vmem:[%s156] sm:$0xf]
    %vm348 = vcmask 1045504
    %v349 = vrot.slane %v230, 2
    %v350 = vrot.slane %v231, 2
    %v351 = vsel %vm348, %v349, %v350
    %v353 = vsel %vm61, %v351, 0
    %v356 = vsel %vm65, %v347, 0
    %358 = vmatprep.subr.bf16.mxu0 0
    %359 = vmatpush1.bf16.msra.mxu0 %v356
    %360 = vmatprep.subr.bf16.mxu0 0
    %361 = vmatpush1.bf16.msra.mxu0 0
    %362 = vmatprep.subr.bf16.mxu0 0
    %363 = vmatpush1.bf16.msra.mxu0 0
    %364 = vmatprep.subr.bf16.mxu0 0
    %365 = vmatpush1.bf16.msra.mxu0 0
    %366 = vmatprep.subr.bf16.mxu0 0
    %367 = vmatpush1.bf16.msra.mxu0 0
    %368 = vmatprep.subr.bf16.mxu0 0
    %369 = vmatpush1.bf16.msra.mxu0 0
    %370 = vmatprep.subr.bf16.mxu0 0
    %371 = vmatpush1.bf16.msra.mxu0 0
    %372 = vmatprep.subr.bf16.mxu0 0
    %373 = vmatpush1.bf16.msra.mxu0 0
    %374 = vmatprep.subr.bf16.mxu0 0
    %375 = vmatpush1.bf16.msra.mxu0 0
    %376 = vmatprep.subr.bf16.mxu0 0
    %377 = vmatpush1.bf16.msra.mxu0 0
    %378 = vmatprep.subr.bf16.mxu0 0
    %379 = vmatpush1.bf16.msra.mxu0 0
    %380 = vmatprep.subr.bf16.mxu0 0
    %381 = vmatpush1.bf16.msra.mxu0 0
    %382 = vmatprep.subr.bf16.mxu0 0
    %383 = vmatpush1.bf16.msra.mxu0 0
    %384 = vmatprep.subr.bf16.mxu0 0
    %385 = vmatpush1.bf16.msra.mxu0 0
    %386 = vmatprep.subr.bf16.mxu0 0
    %387 = vmatpush1.bf16.msra.mxu0 0
    %388 = vmatprep.subr.bf16.mxu0 0
    %389 = vmatpush1.bf16.msra.mxu0 0
    %390 = vmatprep.mubr.bf16.mxu0 0
    %391 = vmatmul.mubr.bf16.gmra.mrb[0].mxu0 %v353
    %v392 = vpop.f32.mrb[0].mxu0
    %v393 = vadd.f32 0.0, %v392
    %v394 = vpop.f32.mrb[0].mxu0
    %v395 = vpop.f32.mrb[0].mxu0
    %v396 = vadd.f32 0.0, %v395
    %v397 = vpop.f32.mrb[0].mxu0
    %398 = vdwg.mxu0
    %v399 = vadd.f32 %v341, %v393
    %v400 = vadd.f32 %v344, %v396
    %v401 = vadd.f32 %v399, %v215
    %v402 = vadd.f32 %v400, %v215
    %v403 = vmax.f32 %v401, 0.0
    %v404 = vmax.f32 %v402, 0.0
    %405 = vst.msk [vmem:[#allocation2 + $0x10] sm:$0xff] %vm221, %v403
    %406 = vst.msk [vmem:[#allocation2 + $0x18] sm:$0xff] %vm221, %v404
    %v407 = vld [vmem:[#allocation2] ss:$2 sm:$0xff]
    %s408 = scalar_lea.vmem [#allocation2], 16
    %v409 = vld [vmem:[%s408] ss:$2 sm:$0xff]
    %s410 = scalar_lea.vmem [#allocation2], 1
    %v411 = vld [vmem:[%s410] ss:$2 sm:$0xff]
    %s412 = scalar_lea.vmem [#allocation2], 17
    %v413 = vld [vmem:[%s412] ss:$2 sm:$0xff]
    %v414 = vmax.f32 %v407, %v411
    %v415 = vmax.f32 %v409, %v413
    %vm418 = vcmask 1046528
    %v419 = vrot.slane %v414, 1
    %v420 = vrot.slane %v415, 1
    %v421 = vsel %vm418, %v419, %v420
    %422 = vrot.lane.b32.xlu0 %v421, 16
    %v423 = vpop.permute.xlu0 %422
    %424 = vrot.lane.b32.xlu0 %v420, 16
    %v425 = vpop.permute.xlu0 %424
    %vm428 = vcmask 1045504
    %v429 = vrot.slane %v414, 2
    %v430 = vrot.slane %v415, 2
    %v431 = vsel %vm428, %v429, %v430
    %432 = vrot.lane.b32.xlu0 %v431, 32
    %v433 = vpop.permute.xlu0 %432
    %434 = vrot.lane.b32.xlu0 %v430, 32
    %v435 = vpop.permute.xlu0 %434
    %v438 = vsel %vm221, %v414, %v423
    %v439 = vsel %vm221, %v415, %v425
    %vm440 = vcmask 261120
    %v441 = vsel %vm440, %v438, %v433
    %v442 = vsel %vm440, %v439, %v435
    %v443 = vpack.c.bf16 %v442, %v441
    %v444 = vld [vmem:[%s3] sm:$0xf]
    %v445 = vld [vmem:[%s3 + $0x4] sm:$0xf]
    %v446 = vld [vmem:[%s3 + $0x8] sm:$0xf]
    %v447 = vld [vmem:[%s3 + $0xc] sm:$0xf]
    %v448 = vld [vmem:[%s3 + $0x10] sm:$0xf]
    %v449 = vld [vmem:[%s3 + $0x14] sm:$0xf]
    %v450 = vld [vmem:[%s4] sm:$0x1]
    %v452 = vlaneseq
    %v453 = vshrl.u32 %v452, 7
    %v454 = vsub.s32 0, %v453
    %v455 = vrot.slane %v450, %v454
    %v463 = vunpack.c.l.b16 %v444
    %v464 = vunpack.c.l.b16 %v445
    %v465 = vunpack.c.l.b16 %v446
    %v466 = vunpack.c.l.b16 %v447
    %v467 = vunpack.c.l.b16 %v448
    %v468 = vunpack.c.l.b16 %v449
    %v469 = vpack.c.b16 %v464, %v463
    %v470 = vpack.c.b16 %v466, %v465
    %v471 = vpack.c.b16 %v468, %v467
    %vm475 = vcmask 392192
    %v477 = vsel %vm475, %v443, 0
    %479 = vmatprep.subr.bf16.mxu0 0
    %480 = vmatpush1.bf16.msra.mxu0 %v469
    %481 = vmatprep.subr.bf16.mxu0 0
    %482 = vmatpush1.bf16.msra.mxu0 %v470
    %483 = vmatprep.subr.bf16.mxu0 0
    %484 = vmatpush1.bf16.msra.mxu0 %v471
    %485 = vmatprep.subr.bf16.mxu0 0
    %486 = vmatpush1.bf16.msra.mxu0 0
    %487 = vmatprep.subr.bf16.mxu0 0
    %488 = vmatpush1.bf16.msra.mxu0 0
    %489 = vmatprep.subr.bf16.mxu0 0
    %490 = vmatpush1.bf16.msra.mxu0 0
    %491 = vmatprep.subr.bf16.mxu0 0
    %492 = vmatpush1.bf16.msra.mxu0 0
    %493 = vmatprep.subr.bf16.mxu0 0
    %494 = vmatpush1.bf16.msra.mxu0 0
    %495 = vmatprep.subr.bf16.mxu0 0
    %496 = vmatpush1.bf16.msra.mxu0 0
    %497 = vmatprep.subr.bf16.mxu0 0
    %498 = vmatpush1.bf16.msra.mxu0 0
    %499 = vmatprep.subr.bf16.mxu0 0
    %500 = vmatpush1.bf16.msra.mxu0 0
    %501 = vmatprep.subr.bf16.mxu0 0
    %502 = vmatpush1.bf16.msra.mxu0 0
    %503 = vmatprep.subr.bf16.mxu0 0
    %504 = vmatpush1.bf16.msra.mxu0 0
    %505 = vmatprep.subr.bf16.mxu0 0
    %506 = vmatpush1.bf16.msra.mxu0 0
    %507 = vmatprep.subr.bf16.mxu0 0
    %508 = vmatpush1.bf16.msra.mxu0 0
    %509 = vmatprep.subr.bf16.mxu0 0
    %510 = vmatpush1.bf16.msra.mxu0 0
    %511 = vmatprep.mubr.bf16.mxu0 0
    %512 = vmatmul.mubr.bf16.gmra.mrb[0].mxu0 %v477
    %v513 = vpop.f32.mrb[0].mxu0
    %v514 = vadd.f32 %v455, %v513
    %v515 = vpop.f32.mrb[0].mxu0
    %v516 = vpop.f32.mrb[0].mxu0
    %v517 = vadd.f32 %v455, %v516
    %v518 = vpop.f32.mrb[0].mxu0
    %519 = vdwg.mxu0
    %v520 = vmax.f32 %v514, 0.0
    %v521 = vmax.f32 %v517, 0.0
    %522 = vst.msk [vmem:[#allocation3] sm:$0xff] %vm221, %v520
    %vm523 = vcmask 128000
    %524 = vst.msk [vmem:[#allocation3 + $0x8] sm:$0x3f] %vm523, %v521
    %v525 = vld [vmem:[#allocation3] ss:$2 sm:$0x7f]
    %s526 = scalar_lea.vmem [#allocation3], 1
    %v527 = vld [vmem:[%s526] ss:$2 sm:$0x7f]
    %v528 = vmax.f32 %v525, %v527
    %v529 = vld [vmem:[%s5] sm:$0x7f]
    %v530 = vld [vmem:[%s6] sm:$0xff]
    %v531 = vld [vmem:[%s6 + $0x8] sm:$0xff]
    %v532 = vmul.f32 %v528, %v529
    %vm533 = vcmask 56320
    %v535 = vsel %vm533, 1.0, 0
    %v538 = vsel %vm418, %v532, 0
    %540 = vmatprep.subr.mxu0 0.0
    %541 = vmatpush1.msra.mxu0 %v538
    %542 = vmatprep.subr.mxu0 0.0
    %543 = vmatpush1.msra.mxu0 0.0
    %544 = vmatprep.subr.mxu0 0.0
    %545 = vmatpush1.msra.mxu0 0.0
    %546 = vmatprep.subr.mxu0 0.0
    %547 = vmatpush1.msra.mxu0 0.0
    %548 = vmatprep.subr.mxu0 0.0
    %549 = vmatpush1.msra.mxu0 0.0
    %550 = vmatprep.subr.mxu0 0.0
    %551 = vmatpush1.msra.mxu0 0.0
    %552 = vmatprep.subr.mxu0 0.0
    %553 = vmatpush1.msra.mxu0 0.0
    %554 = vmatprep.subr.mxu0 0.0
    %555 = vmatpush1.msra.mxu0 0.0
    %556 = vmatprep.subr.mxu0 0.0
    %557 = vmatpush1.msra.mxu0 0.0
    %558 = vmatprep.subr.mxu0 0.0
    %559 = vmatpush1.msra.mxu0 0.0
    %560 = vmatprep.subr.mxu0 0.0
    %561 = vmatpush1.msra.mxu0 0.0
    %562 = vmatprep.subr.mxu0 0.0
    %563 = vmatpush1.msra.mxu0 0.0
    %564 = vmatprep.subr.mxu0 0.0
    %565 = vmatpush1.msra.mxu0 0.0
    %566 = vmatprep.subr.mxu0 0.0
    %567 = vmatpush1.msra.mxu0 0.0
    %568 = vmatprep.subr.mxu0 0.0
    %569 = vmatpush1.msra.mxu0 0.0
    %570 = vmatprep.subr.mxu0 0.0
    %571 = vmatpush1.msra.mxu0 0.0
    %572 = vmatprep.subr.mxu0 0.0
    %573 = vmatpush1.msra.mxu0 0.0
    %574 = vmatprep.subr.mxu0 0.0
    %575 = vmatpush1.msra.mxu0 0.0
    %576 = vmatprep.subr.mxu0 0.0
    %577 = vmatpush1.msra.mxu0 0.0
    %578 = vmatprep.subr.mxu0 0.0
    %579 = vmatpush1.msra.mxu0 0.0
    %580 = vmatprep.subr.mxu0 0.0
    %581 = vmatpush1.msra.mxu0 0.0
    %582 = vmatprep.subr.mxu0 0.0
    %583 = vmatpush1.msra.mxu0 0.0
    %584 = vmatprep.subr.mxu0 0.0
    %585 = vmatpush1.msra.mxu0 0.0
    %586 = vmatprep.subr.mxu0 0.0
    %587 = vmatpush1.msra.mxu0 0.0
    %588 = vmatprep.subr.mxu0 0.0
    %589 = vmatpush1.msra.mxu0 0.0
    %590 = vmatprep.subr.mxu0 0.0
    %591 = vmatpush1.msra.mxu0 0.0
    %592 = vmatprep.subr.mxu0 0.0
    %593 = vmatpush1.msra.mxu0 0.0
    %594 = vmatprep.subr.mxu0 0.0
    %595 = vmatpush1.msra.mxu0 0.0
    %596 = vmatprep.subr.mxu0 0.0
    %597 = vmatpush1.msra.mxu0 0.0
    %598 = vmatprep.subr.mxu0 0.0
    %599 = vmatpush1.msra.mxu0 0.0
    %600 = vmatprep.subr.mxu0 0.0
    %601 = vmatpush1.msra.mxu0 0.0
    %602 = vmatprep.subr.mxu0 0.0
    %603 = vmatpush1.msra.mxu0 0.0
    %604 = vmatprep.mubr.f32.mxu0 0.0
    %605 = vmatmul.mubr.f32.gmra.mrb[0].mxu0 %v535
    %v606 = vpop.f32.mrb[0].mxu0
    %v607 = vadd.f32 0.0, %v606
    %v608 = vpop.f32.mrb[0].mxu0
    %609 = vdwg.mxu0
    %v610 = vld [vmem:[%s7] sm:$0x1]
    %v612 = vsel %vm221, %v607, 0
    %614 = vmatprep.subr.mxu0 0.0
    %615 = vmatpush1.msra.mxu0 %v530
    %616 = vmatprep.subr.mxu0 0.0
    %617 = vmatpush1.msra.mxu0 %v531
    %618 = vmatprep.subr.mxu0 0.0
    %619 = vmatpush1.msra.mxu0 0.0
    %620 = vmatprep.subr.mxu0 0.0
    %621 = vmatpush1.msra.mxu0 0.0
    %622 = vmatprep.subr.mxu0 0.0
    %623 = vmatpush1.msra.mxu0 0.0
    %624 = vmatprep.subr.mxu0 0.0
    %625 = vmatpush1.msra.mxu0 0.0
    %626 = vmatprep.subr.mxu0 0.0
    %627 = vmatpush1.msra.mxu0 0.0
    %628 = vmatprep.subr.mxu0 0.0
    %629 = vmatpush1.msra.mxu0 0.0
    %630 = vmatprep.subr.mxu0 0.0
    %631 = vmatpush1.msra.mxu0 0.0
    %632 = vmatprep.subr.mxu0 0.0
    %633 = vmatpush1.msra.mxu0 0.0
    %634 = vmatprep.subr.mxu0 0.0
    %635 = vmatpush1.msra.mxu0 0.0
    %636 = vmatprep.subr.mxu0 0.0
    %637 = vmatpush1.msra.mxu0 0.0
    %638 = vmatprep.subr.mxu0 0.0
    %639 = vmatpush1.msra.mxu0 0.0
    %640 = vmatprep.subr.mxu0 0.0
    %641 = vmatpush1.msra.mxu0 0.0
    %642 = vmatprep.subr.mxu0 0.0
    %643 = vmatpush1.msra.mxu0 0.0
    %644 = vmatprep.subr.mxu0 0.0
    %645 = vmatpush1.msra.mxu0 0.0
    %646 = vmatprep.subr.mxu0 0.0
    %647 = vmatpush1.msra.mxu0 0.0
    %648 = vmatprep.subr.mxu0 0.0
    %649 = vmatpush1.msra.mxu0 0.0
    %650 = vmatprep.subr.mxu0 0.0
    %651 = vmatpush1.msra.mxu0 0.0
    %652 = vmatprep.subr.mxu0 0.0
    %653 = vmatpush1.msra.mxu0 0.0
    %654 = vmatprep.subr.mxu0 0.0
    %655 = vmatpush1.msra.mxu0 0.0
    %656 = vmatprep.subr.mxu0 0.0
    %657 = vmatpush1.msra.mxu0 0.0
    %658 = vmatprep.subr.mxu0 0.0
    %659 = vmatpush1.msra.mxu0 0.0
    %660 = vmatprep.subr.mxu0 0.0
    %661 = vmatpush1.msra.mxu0 0.0
    %662 = vmatprep.subr.mxu0 0.0
    %663 = vmatpush1.msra.mxu0 0.0
    %664 = vmatprep.subr.mxu0 0.0
    %665 = vmatpush1.msra.mxu0 0.0
    %666 = vmatprep.subr.mxu0 0.0
    %667 = vmatpush1.msra.mxu0 0.0
    %668 = vmatprep.subr.mxu0 0.0
    %669 = vmatpush1.msra.mxu0 0.0
    %670 = vmatprep.subr.mxu0 0.0
    %671 = vmatpush1.msra.mxu0 0.0
    %672 = vmatprep.subr.mxu0 0.0
    %673 = vmatpush1.msra.mxu0 0.0
    %674 = vmatprep.subr.mxu0 0.0
    %675 = vmatpush1.msra.mxu0 0.0
    %676 = vmatprep.subr.mxu0 0.0
    %677 = vmatpush1.msra.mxu0 0.0
    %678 = vmatprep.mubr.f32.mxu0 0.0
    %679 = vmatmul.mubr.f32.gmra.mrb[0].mxu0 %v612
    %v680 = vpop.f32.mrb[0].mxu0
    %v681 = vadd.f32 %v610, %v680
    %v682 = vpop.f32.mrb[0].mxu0
    %683 = vdwg.mxu0
    %v684 = vsub.f32 0.0, %v681
    %v685 = vmul.f32 %v684, 1.442695
    %v686 = vpow.pop %v685
    %v687 = vadd.f32 %v686, 1.0
    %v688 = vrcp.pop %v687
    %vm689 = vcmask 8192
    %690 = vst.msk [vmem:[#allocation4] sm:$0x1] %vm689, %v688
    // Predicated region
    $region34: #{forward.1} parent=1 // pred_check
      _
    $region35: #{forward.1} parent=1 // pred_check_branch
      %692 = sbr.rel (0) target = $region37
    $region36: #{forward.1} parent=1 // pred_region
      %s694 = ssub.s32 16, 16
      %695 = vsyncadd [#allocation5], %s694
      %s697 = sshll.u32 [#allocation4], 4
      %s698 = int_to_ptr.vmem [resolvable:$true] %s697
      %700 = dma.vmem_to_hbm [thread:$0]  %s698, 16, %s8, [#allocation5]
    $region37: #{forward.1} parent=1 // pred_fallthru
      _
    // Predicated region
    $region38: #{forward.1} parent=1 // pred_check
      _
    $region39: #{forward.1} parent=1 // pred_check_branch
      %702 = sbr.rel (0) target = $region41
    $region40: #{forward.1} parent=1 // pred_region
      %703 = dma.done [#allocation5], 16
    $region41: #{forward.1} parent=1 // pred_fallthru
      _
    %704 = vsyncpa [#allocation5], 1

</llo_original>
